<compile_context>
chip_gen: v5e
topology: v5e:2x2
jax: 0.10.0
libtpu: 0.0.40
codegen_flags: <defaults>
</compile_context>

<pallas_src>
import jax
import jax.numpy as jnp
from jax.experimental import pallas as pl
from jax.experimental.pallas import tpu as pltpu


def _round_up(x, m):
    return ((x + m - 1) // m) * m


def _pick_tile(dim, unit, max_tile):
    """Choose (tile, padded_dim, n_tiles) for one dimension.

    dim <= max_tile: a single full-extent block (exempt from the (8,128)
    block-shape rule; no padding, no output slice).  Otherwise: fewest grid
    steps under the cap, tile a multiple of `unit`, minimal zero padding for
    that step count.
    """
    if dim <= max_tile:
        return dim, dim, 1
    n_tiles = -(-dim // max_tile)                       # ceil
    tile = _round_up(-(-dim // n_tiles), unit)          # smallest unit-multiple
    return tile, tile * n_tiles, n_tiles


def _patch_embed_kernel(p_ref, w_ref, b_ref, o_ref):
    # p_ref: (1, TP, K)   patch tile            (compute dtype)
    # w_ref: (K, TE)      resident weight tile  (compute dtype)
    # b_ref: (1, TE)      bias tile             (f32)
    # o_ref: (1, TP, TE)  output tile
    p = p_ref[0]                         # (TP, K)
    w = w_ref[...]                       # (K, TE)
    # Full f32 accuracy when operands are f32 (exact parity with the conv);
    # bf16 operands use the native single-pass MXU path with f32 accumulate.
    prec = jax.lax.Precision.HIGHEST if p.dtype == jnp.float32 else None
    acc = jnp.dot(p, w, precision=prec, preferred_element_type=jnp.float32)
    acc = acc + b_ref[...]               # (1, TE) f32 bias broadcast over rows
    o_ref[0] = acc.astype(o_ref.dtype)


def patch_embed_forward(x, weight, bias, patch_size, patch_stride, mask=None,
                        *, compute_dtype=None, out_dtype=None,
                        max_p_tile=1024, max_e_tile=1024):
    """PatchEmbed forward.

    x: (N, C, H, W); weight: (E, C, ph, pw) [nn.Conv2d layout]; bias: (E,).
    Returns (tokens (N, Hp*Wp, E), (Hp, Wp), mask) exactly like the PyTorch
    module (Conv2d with kernel == stride, then flatten(2).transpose(1, 2)).
    """
    N, C, H, W = x.shape
    E = weight.shape[0]
    ph, pw = patch_size
    sh, sw = patch_stride
    assert (ph, pw) == (sh, sw), "non-overlapping patches assumed (stride == kernel)"
    assert H % sh == 0 and W % sw == 0, "image dims must be divisible by the stride"
    Hp, Wp = H // sh, W // sw
    P = Hp * Wp
    K = C * ph * pw

    compute_dtype = x.dtype if compute_dtype is None else jnp.dtype(compute_dtype)
    out_dtype = x.dtype if out_dtype is None else jnp.dtype(out_dtype)
    cisz = jnp.dtype(compute_dtype).itemsize
    oisz = jnp.dtype(out_dtype).itemsize

    # ---- tile choices -------------------------------------------------------
    # Token-dim sublane unit: 16 when any bf16 operand/output is involved.
    p_unit = 8 if (cisz >= 4 and oisz >= 4) else 16
    TP, Pp, p_tiles = _pick_tile(P, p_unit, max_p_tile)
    TE, Ep, e_tiles = _pick_tile(E, 128, max_e_tile)

    # v7x has two TensorCores: keep >= 2 parallel grid steps when possible so
    # small-batch inference doesn't collapse to a single un-pipelined step.
    if e_tiles * N * p_tiles < 2:
        if TE % 256 == 0:
            TE //= 2
            e_tiles = Ep // TE
        elif TP % (2 * p_unit) == 0:
            TP //= 2
            p_tiles = Pp // TP

    # ---- im2col glue (layout only; stride == kernel so patches don't overlap)
    # TODO(synk): fuse this HBM transpose into the kernel with manual strided
    # DMAs (memory_space=pl.ANY) to remove the extra input round trip.
    xc = x.astype(compute_dtype)
    patches = xc.reshape(N, C, Hp, ph, Wp, pw)
    patches = jnp.transpose(patches, (0, 2, 4, 1, 3, 5)).reshape(N, P, K)
    if Pp != P:
        patches = jnp.pad(patches, ((0, 0), (0, Pp - P), (0, 0)))

    # Conv weight (E, C, ph, pw) -> (K, E): a tiny one-time transpose so the
    # kernel runs a canonical row-major contraction against the resident tile.
    w2d = weight.reshape(E, K).T.astype(compute_dtype)        # (K, E)
    b2d = bias.astype(jnp.float32).reshape(1, E)
    if Ep != E:
        w2d = jnp.pad(w2d, ((0, 0), (0, Ep - E)))
        b2d = jnp.pad(b2d, ((0, 0), (0, Ep - E)))

    # Grid ordered (E, N, P): the weight block index only changes on the
    # outermost axis, so the whole weight is DMA'd exactly once per call.
    grid = (e_tiles, N, p_tiles)

    # VMEM budget: double-buffered patch/out tiles + weight + bias (+ slack).
    vmem_bytes = (2 * TP * K * cisz + 2 * K * TE * cisz
                  + 2 * TE * 4 + 2 * TP * TE * oisz)
    vmem_limit = min(max(int(vmem_bytes * 1.5) + (2 << 20), 16 << 20), 64 << 20)

    cost = pl.CostEstimate(
        flops=2 * N * Pp * K * Ep,
        transcendentals=0,
        bytes_accessed=(N * Pp * K * cisz        # patches, read once
                        + K * Ep * cisz          # weight, read once (resident)
                        + Ep * 4                 # bias
                        + N * Pp * Ep * oisz))   # tokens, written once

    out = pl.pallas_call(
        _patch_embed_kernel,
        out_shape=jax.ShapeDtypeStruct((N, Pp, Ep), out_dtype),
        grid_spec=pltpu.PrefetchScalarGridSpec(
            num_scalar_prefetch=0,
            grid=grid,
            in_specs=[
                pl.BlockSpec((1, TP, K), lambda e, n, p: (n, p, 0)),
                pl.BlockSpec((K, TE), lambda e, n, p: (0, e)),
                pl.BlockSpec((1, TE), lambda e, n, p: (0, e)),
            ],
            out_specs=pl.BlockSpec((1, TP, TE), lambda e, n, p: (n, p, e)),
        ),
        compiler_params=pltpu.CompilerParams(
            dimension_semantics=("parallel", "parallel", "parallel"),
            vmem_limit_bytes=vmem_limit,
        ),
        cost_estimate=cost,
    )(patches, w2d, b2d)

    # No slice copy in the common case (P, E fit their tiles unpadded).
    tokens = out if (Pp == P and Ep == E) else out[:, :P, :E]

    if mask is not None:
        # F.interpolate default mode='nearest' to (Hp, Wp), then bool.
        # TODO(synk): nearest-pixel selection can differ from torch for
        # non-integer H/Hp, W/Wp scale factors; verify parity on real ratios.
        mask = jax.image.resize(mask.astype(jnp.float32), (N, Hp, Wp),
                                method="nearest").astype(jnp.bool_)

    return tokens, (Hp, Wp), mask


if __name__ == "__main__":
    # Small shapes: batch=2, in_chans=4, img=16x16, patch=4, stride=4,
    # embed_dim=32 -> Hp=Wp=4, num_patches=16, K=64.
    N, C, H, W = 2, 4, 16, 16
    patch = (4, 4)
    stride = (4, 4)
    E = 32

    key = jax.random.PRNGKey(0)
    kx, kw, kb = jax.random.split(key, 3)

    x = jax.random.normal(kx, (N, C, H, W), dtype=jnp.float32)

    # Deterministic parameter init (Conv2d-style uniform bounds).
    fan_in = C * patch[0] * patch[1]
    bound = 1.0 / float(fan_in) ** 0.5
    weight = jax.random.uniform(kw, (E, C, patch[0], patch[1]),
                                minval=-bound, maxval=bound, dtype=jnp.float32)
    bias = jax.random.uniform(kb, (E,), minval=-bound, maxval=bound,
                              dtype=jnp.float32)

    Hp, Wp = H // stride[0], W // stride[1]

    # Reference: f32 conv (same semantics as nn.Conv2d) + flatten/transpose.
    ref = jax.lax.conv_general_dilated(
        x, weight, window_strides=stride, padding="VALID",
        dimension_numbers=("NCHW", "OIHW", "NCHW"),
        precision=jax.lax.Precision.HIGHEST)
    ref = ref + bias[None, :, None, None]
    ref = ref.reshape(N, E, Hp * Wp).transpose(0, 2, 1)

    # 1) Default path: f32 compute -> exact parity with the PyTorch f32 conv.
    tok, (hp, wp), _ = patch_embed_forward(x, weight, bias, patch, stride)
    tok = jax.block_until_ready(tok)
    assert tok.shape == (N, Hp * Wp, E), tok.shape
    assert (hp, wp) == (Hp, Wp)
    err = float(jnp.max(jnp.abs(tok - ref)))
    assert jnp.allclose(tok, ref, atol=1e-4, rtol=1e-4), err

    # 2) bf16 MXU operands + bf16 tokens (f32 accumulate), with a mask.
    mask_in = jnp.ones((N, H, W), dtype=jnp.bool_)
    tok_bf16, (hp2, wp2), mask_out = patch_embed_forward(
        x, weight, bias, patch, stride, mask=mask_in,
        compute_dtype=jnp.bfloat16, out_dtype=jnp.bfloat16)
    tok_bf16 = jax.block_until_ready(tok_bf16)
    assert tok_bf16.shape == (N, Hp * Wp, E), tok_bf16.shape
    assert tok_bf16.dtype == jnp.bfloat16
    assert (hp2, wp2) == (Hp, Wp)
    assert mask_out.shape == (N, Hp, Wp) and bool(mask_out.all())
    err_bf16 = float(jnp.max(jnp.abs(tok_bf16.astype(jnp.float32) - ref)))
    assert jnp.allclose(tok_bf16.astype(jnp.float32), ref,
                        atol=5e-2, rtol=5e-2), err_bf16

    # 3) N == 1 exercises the ">=2 grid steps for v7x" split heuristic.
    tok1, _, _ = patch_embed_forward(x[:1], weight, bias, patch, stride)
    tok1 = jax.block_until_ready(tok1)
    err1 = float(jnp.max(jnp.abs(tok1 - ref[:1])))
    assert jnp.allclose(tok1, ref[:1], atol=1e-4, rtol=1e-4), err1

    print("KERNEL_OK")
</pallas_src>

<mosaic_0001>
module attributes {stable_mosaic.version = 11 : i64} {
  func.func @_patch_embed_kernel(%arg0: i32, %arg1: i32, %arg2: i32, %arg3: memref<1x16x64xf32, #tpu.memory_space<vmem>>, %arg4: memref<64x32xf32, #tpu.memory_space<vmem>>, %arg5: memref<1x32xf32, #tpu.memory_space<vmem>>, %arg6: memref<1x16x32xf32, #tpu.memory_space<vmem>>) attributes {dimension_semantics = [#tpu.dimension_semantics<parallel>, #tpu.dimension_semantics<parallel>, #tpu.dimension_semantics<parallel>], iteration_bounds = array<i64: 1, 2, 1>, scalar_prefetch = 0 : i64, scratch_operands = 0 : i64, tpu.core_type = #tpu.core_type<tc>, window_params = [{transform_indices = @transform_0, window_bounds = array<i64: 1, 16, 64>}, {transform_indices = @transform_1, window_bounds = array<i64: 64, 32>}, {transform_indices = @transform_2, window_bounds = array<i64: 1, 32>}, {transform_indices = @transform_3, window_bounds = array<i64: 1, 16, 32>}]} {
    %c0 = arith.constant 0 : index
    %c0_0 = arith.constant 0 : index
    %c0_1 = arith.constant 0 : index
    %0 = vector.load %arg3[%c0, %c0_0, %c0_1] : memref<1x16x64xf32, #tpu.memory_space<vmem>>, vector<1x16x64xf32>
    %1 = vector.shape_cast %0 : vector<1x16x64xf32> to vector<16x64xf32>
    %c0_2 = arith.constant 0 : index
    %c0_3 = arith.constant 0 : index
    %2 = vector.load %arg4[%c0_2, %c0_3] : memref<64x32xf32, #tpu.memory_space<vmem>>, vector<64x32xf32>
    %cst = arith.constant dense<0.000000e+00> : vector<16x32xf32>
    %3 = tpu.matmul %1, %2, %cst {dimension_numbers = #tpu.dot_dimension_numbers<[1], [0], [0], [1], [0, 0, 1, 1], [], []>, precision = #tpu.contract_precision<fp32>} : vector<16x64xf32>, vector<64x32xf32>, vector<16x32xf32> -> vector<16x32xf32>
    %c0_4 = arith.constant 0 : index
    %c0_5 = arith.constant 0 : index
    %4 = vector.load %arg5[%c0_4, %c0_5] : memref<1x32xf32, #tpu.memory_space<vmem>>, vector<1x32xf32>
    %5 = vector.broadcast %4 : vector<1x32xf32> to vector<16x32xf32>
    %6 = arith.addf %3, %5 : vector<16x32xf32>
    %c0_6 = arith.constant 0 : index
    %c0_7 = arith.constant 0 : index
    %c0_8 = arith.constant 0 : index
    %7 = vector.load %arg6[%c0_6, %c0_7, %c0_8] : memref<1x16x32xf32, #tpu.memory_space<vmem>>, vector<1x16x32xf32>
    %8 = vector.shape_cast %7 : vector<1x16x32xf32> to vector<16x32xf32>
    %9 = vector.shape_cast %6 : vector<16x32xf32> to vector<1x16x32xf32>
    tpu.vector_store %arg6[%c0_6, %c0_7, %c0_8], %9 {strides = array<i32>} : memref<1x16x32xf32, #tpu.memory_space<vmem>>, vector<1x16x32xf32>,
    return
  }
  func.func @transform_0(%arg0: i32, %arg1: i32, %arg2: i32) -> (i32, i32, i32) {
    %c0_i32 = arith.constant 0 : i32
    %c0_i32_0 = arith.constant 0 : i32
    return %arg1, %arg2, %c0_i32 : i32, i32, i32
  }
  func.func @transform_1(%arg0: i32, %arg1: i32, %arg2: i32) -> (i32, i32) {
    %c0_i32 = arith.constant 0 : i32
    %c0_i32_0 = arith.constant 0 : i32
    return %c0_i32, %arg0 : i32, i32
  }
  func.func @transform_2(%arg0: i32, %arg1: i32, %arg2: i32) -> (i32, i32) {
    %c0_i32 = arith.constant 0 : i32
    %c0_i32_0 = arith.constant 0 : i32
    return %c0_i32, %arg0 : i32, i32
  }
  func.func @transform_3(%arg0: i32, %arg1: i32, %arg2: i32) -> (i32, i32, i32) {
    %c0_i32 = arith.constant 0 : i32
    return %arg1, %arg2, %arg0 : i32, i32, i32
  }
}

</mosaic_0001>

<llo_original>
// kernel: tpu_custom_call.1
$region0: #{tpu_custom_call.1}
  #allocation0 [shape = 'u32[]', space=smem, size = 0x4, offset = 0x4, fixed_abs, tag = 'smem constant byte address 0x4 - core index']
  #allocation1 [shape = 'u32[72,128]{1,0:T(1,128)}', space=vmem, size = 0x9000, scoped, tag = 'internal scratch']
  %s0 = inlined_call_operand.vmem [shape: f32[2,16,64], index: 0, kind: input, shape index: {}]
  %s1 = inlined_call_operand.vmem [shape: f32[64,32], index: 1, kind: input, shape index: {}]
  %s2 = inlined_call_operand.vmem [shape: f32[1,32], index: 2, kind: input, shape index: {}]
  %s3 = inlined_call_operand.hbm [shape: f32[2,16,32], index: 3, kind: output, shape index: {}]
  %s4 = sld [smem:[#allocation0]]
  $region45: #{tpu_custom_call.1} parent=0
    _
  %s6 = ssub.s32 1, %s4
  %s7 = scalar_select 0, %s6, %s4
  $region1: #{tpu_custom_call.1} parent=0
    #allocation2 [shape = 'u8[16384]{0}', space=vmem, size = 0x4000, scoped, tag = 'output window, operand 0']
    #allocation3 [shape = 's32[2]{0}', space=sflag, size = 0x8, scoped, tag = 'scoped memory for tpu_custom_call.1']
    %8 = vsyncpa [#allocation3], 0
    %s9 = scalar_lea.sflag [#allocation3], 1
    %10 = vsyncpa %s9, 0
    loop: start=0, step=1, limit=4
    $region2: #{tpu_custom_call.1} parent=1 // loop_pre_header
      _
    $region3: #{tpu_custom_call.1} parent=1 // loop_header
      %s12 = sphi 0, %s16
      %p13 = scmp.ge.s32.totalorder %s12, 4
      %s19 = sphi 0, %s38
      %s20 = sphi 0, %s34
      %s21 = sphi 0, %s30
      %s22 = sphi 0, %s19
      %s23 = sphi 0, %s20
      %s24 = sphi 0, %s21
      %s25 = sphi 0, %s22
      %s26 = sphi 0, %s23
      %s27 = sphi 0, %s24
      %s43 = sphi 0, %s45
      %s46 = sphi 0, %s43
      %s47 = sphi 0, %s46
      %s63 = sphi 0, %s47
      %s69 = sphi 0, %s71
      %s72 = sphi 0, %s69
      %s73 = sphi 0, %s72
      %s89 = sphi 0, %s73
      %s95 = sphi 0, %s97
      %s98 = sphi 0, %s95
      %s99 = sphi 0, %s98
      %s115 = sphi 0, %s99
      %s125 = sphi 0, %s127
      %s128 = sphi 0, %s125
      %s129 = sphi 0, %s128
      %s145 = sphi 0, %s129
    $region4: #{tpu_custom_call.1} parent=1 // loop_header_branch
      %15 = sbr.rel (%p13) target = $region8
    $region5: #{tpu_custom_call.1} parent=1 // loop_body
      %s17 = ssub.s32 %s12, 1
      %s18 = ssub.s32 %s12, 2
      %s28 = sadd.s32 1, %s21
      %p29 = scmp.ge.s32.totalorder %s28, 1
      %s30 = scalar_select %p29, 0, %s28
      %s31 = sadd.s32 1, %s20
      %s32 = scalar_select %p29, %s31, %s20
      %p33 = scmp.ge.s32.totalorder %s32, 2
      %s34 = scalar_select %p33, 0, %s32
      %s35 = sadd.s32 1, %s19
      %s36 = scalar_select %p33, %s35, %s19
      %p37 = scmp.ge.s32.totalorder %s36, 1
      %s38 = scalar_select %p37, 0, %s36
      %s39 = ssub.s32 %s20, %s34
      %s40 = ssub.s32 %s21, %s30
      %s41 = sor.u32 %s39, %s40
      %p42 = scmp.eq.s32.totalorder %s41, 0
      %s44 = sadd.s32 %s43, 1
      %s45 = scalar_select %p42, %s43, %s44
      %p48 = pneg %p42
      %p49 = scmp.eq.s32.totalorder %s12, 1
      %p50 = por %p48, %p49
      %p51 = scmp.ne.s32.totalorder %s43, %s46
      %p52 = scmp.eq.s32.totalorder %s12, 0
      %p53 = por %p51, %p52
      %p54 = scmp.ne.s32.totalorder %s43, %s46
      %p55 = scmp.eq.s32.totalorder %s17, 1
      %p56 = por %p54, %p55
      %p57 = scmp.ne.s32.totalorder %s46, %s47
      %p58 = scmp.eq.s32.totalorder %s17, 0
      %p59 = por %p57, %p58
      %p60 = scmp.ne.s32.totalorder %s46, %s47
      %p61 = scmp.eq.s32.totalorder %s18, 1
      %p62 = por %p60, %p61
      %p64 = scmp.ne.s32.totalorder %s47, %s63
      %p65 = scmp.eq.s32.totalorder %s18, 0
      %p66 = por %p64, %p65
      %s67 = ssub.s32 %s19, %s38
      %p68 = scmp.eq.s32.totalorder %s67, 0
      %s70 = sadd.s32 %s69, 1
      %s71 = scalar_select %p68, %s69, %s70
      %p74 = pneg %p68
      %p75 = scmp.eq.s32.totalorder %s12, 1
      %p76 = por %p74, %p75
      %p77 = scmp.ne.s32.totalorder %s69, %s72
      %p78 = scmp.eq.s32.totalorder %s12, 0
      %p79 = por %p77, %p78
      %p80 = scmp.ne.s32.totalorder %s69, %s72
      %p81 = scmp.eq.s32.totalorder %s17, 1
      %p82 = por %p80, %p81
      %p83 = scmp.ne.s32.totalorder %s72, %s73
      %p84 = scmp.eq.s32.totalorder %s17, 0
      %p85 = por %p83, %p84
      %p86 = scmp.ne.s32.totalorder %s72, %s73
      %p87 = scmp.eq.s32.totalorder %s18, 1
      %p88 = por %p86, %p87
      %p90 = scmp.ne.s32.totalorder %s73, %s89
      %p91 = scmp.eq.s32.totalorder %s18, 0
      %p92 = por %p90, %p91
      %s93 = ssub.s32 %s19, %s38
      %p94 = scmp.eq.s32.totalorder %s93, 0
      %s96 = sadd.s32 %s95, 1
      %s97 = scalar_select %p94, %s95, %s96
      %p100 = pneg %p94
      %p101 = scmp.eq.s32.totalorder %s12, 1
      %p102 = por %p100, %p101
      %p103 = scmp.ne.s32.totalorder %s95, %s98
      %p104 = scmp.eq.s32.totalorder %s12, 0
      %p105 = por %p103, %p104
      %p106 = scmp.ne.s32.totalorder %s95, %s98
      %p107 = scmp.eq.s32.totalorder %s17, 1
      %p108 = por %p106, %p107
      %p109 = scmp.ne.s32.totalorder %s98, %s99
      %p110 = scmp.eq.s32.totalorder %s17, 0
      %p111 = por %p109, %p110
      %p112 = scmp.ne.s32.totalorder %s98, %s99
      %p113 = scmp.eq.s32.totalorder %s18, 1
      %p114 = por %p112, %p113
      %p116 = scmp.ne.s32.totalorder %s99, %s115
      %p117 = scmp.eq.s32.totalorder %s18, 0
      %p118 = por %p116, %p117
      %s119 = ssub.s32 %s20, %s34
      %s120 = ssub.s32 %s21, %s30
      %s121 = sor.u32 %s119, %s120
      %s122 = ssub.s32 %s19, %s38
      %s123 = sor.u32 %s121, %s122
      %p124 = scmp.eq.s32.totalorder %s123, 0
      %s126 = sadd.s32 %s125, 1
      %s127 = scalar_select %p124, %s125, %s126
      %p130 = pneg %p124
      %p131 = scmp.eq.s32.totalorder %s12, 1
      %p132 = por %p130, %p131
      %p133 = scmp.ne.s32.totalorder %s125, %s128
      %p134 = scmp.eq.s32.totalorder %s12, 0
      %p135 = por %p133, %p134
      %p136 = scmp.ne.s32.totalorder %s125, %s128
      %p137 = scmp.eq.s32.totalorder %s17, 1
      %p138 = por %p136, %p137
      %p139 = scmp.ne.s32.totalorder %s128, %s129
      %p140 = scmp.eq.s32.totalorder %s17, 0
      %p141 = por %p139, %p140
      %p142 = scmp.ne.s32.totalorder %s128, %s129
      %p143 = scmp.eq.s32.totalorder %s18, 1
      %p144 = por %p142, %p143
      %p146 = scmp.ne.s32.totalorder %s129, %s145
      %p147 = scmp.eq.s32.totalorder %s18, 0
      %p148 = por %p146, %p147
      %p149 = scmp.le.s32.totalorder 1, %s12
      %p150 = scmp.lt.s32.totalorder %s12, 3
      %p151 = pnand %p149, %p150
      %p152 = pneg %p151
      // Predicated region
      $region9: #{tpu_custom_call.1} parent=5 // pred_check
        _
      $region10: #{tpu_custom_call.1} parent=5 // pred_check_branch
        %154 = sbr.rel (%p151) target = $region12
      $region11: #{tpu_custom_call.1} parent=5 // pred_region
        %s155 = ssub.s32 %s12, 1
        // Predicated region
        $region13: #{tpu_custom_call.1} parent=11 // pred_check
          %p156 = pneg %p85
        $region14: #{tpu_custom_call.1} parent=11 // pred_check_branch
          %158 = sbr.rel (%p156) target = $region16
        $region15: #{tpu_custom_call.1} parent=11 // pred_region
          %p159 = scmp.lt.s32.totalorder %s22, 0
          %s160 = scalar_select %p159, %s22, 0
          %s161 = smul.addr %s160, 8
          %s162 = scalar_lea.vmem %s1, %s161
        $region16: #{tpu_custom_call.1} parent=11 // pred_fallthru
          _
        // Predicated region
        $region17: #{tpu_custom_call.1} parent=11 // pred_check
          %p163 = pneg %p111
        $region18: #{tpu_custom_call.1} parent=11 // pred_check_branch
          %165 = sbr.rel (%p163) target = $region20
        $region19: #{tpu_custom_call.1} parent=11 // pred_region
          %p166 = scmp.lt.s32.totalorder %s22, 0
          %s167 = scalar_select %p166, %s22, 0
          %s168 = scalar_lea.vmem %s2, %s167
        $region20: #{tpu_custom_call.1} parent=11 // pred_fallthru
          _
      $region12: #{tpu_custom_call.1} parent=5 // pred_fallthru
        _
      %p169 = scmp.lt.s32.totalorder %s12, 2
      // Predicated region
      $region21: #{tpu_custom_call.1} parent=5 // pred_check
        %p170 = pneg %p169
      $region22: #{tpu_custom_call.1} parent=5 // pred_check_branch
        %172 = sbr.rel (%p170) target = $region24
      $region23: #{tpu_custom_call.1} parent=5 // pred_region
        // Predicated region
        $region25: #{tpu_custom_call.1} parent=23 // pred_check
          %p173 = pneg %p53
        $region26: #{tpu_custom_call.1} parent=23 // pred_check_branch
          %175 = sbr.rel (%p173) target = $region28
        $region27: #{tpu_custom_call.1} parent=23 // pred_region
          %s176 = smul.u32 2, %s21
          %p177 = scmp.lt.s32.totalorder %s20, 1
          %s178 = scalar_select %p177, %s20, 1
          %p179 = scmp.lt.s32.totalorder %s176, 1
          %s180 = scalar_select %p179, %s176, 1
          %s181 = smul.addr %s178, 2
          %s182 = sadd.s32 %s180, %s181
          %s183 = smul.addr %s182, 8
          %s184 = scalar_lea.vmem %s0, %s183
          %s185 = smul.u32 2, %s21
        $region28: #{tpu_custom_call.1} parent=23 // pred_fallthru
          _
      $region24: #{tpu_custom_call.1} parent=5 // pred_fallthru
        _
      %p186 = scmp.le.s32.totalorder 1, %s12
      %p187 = scmp.lt.s32.totalorder %s12, 3
      %p188 = pnand %p186, %p187
      %p189 = pneg %p188
      // Predicated region
      $region29: #{tpu_custom_call.1} parent=5 // pred_check
        _
      $region30: #{tpu_custom_call.1} parent=5 // pred_check_branch
        %191 = sbr.rel (%p188) target = $region32
      $region31: #{tpu_custom_call.1} parent=5 // pred_region
        %s192 = ssub.s32 %s12, 1
        %s193 = smul.u32 2, %s24
        %p194 = scmp.lt.s32.totalorder %s23, 1
        %s195 = scalar_select %p194, %s23, 1
        %p196 = scmp.lt.s32.totalorder %s193, 1
        %s197 = scalar_select %p196, %s193, 1
        %s198 = smul.addr %s195, 2
        %s199 = sadd.s32 %s197, %s198
        %s200 = smul.addr %s199, 8
        %s201 = scalar_lea.vmem %s0, %s200
        %p202 = pneg %p59
        %p203 = pneg %p56
        %p204 = scmp.lt.s32.totalorder %s22, 0
        %s205 = scalar_select %p204, %s22, 0
        %s206 = smul.addr %s205, 8
        %s207 = scalar_lea.vmem %s1, %s206
        %p208 = pneg %p85
        %p209 = pneg %p82
        %p210 = scmp.lt.s32.totalorder %s22, 0
        %s211 = scalar_select %p210, %s22, 0
        %s212 = scalar_lea.vmem %s2, %s211
        %p213 = pneg %p111
        %p214 = pneg %p108
        %p215 = pneg %p141
        %p216 = pneg %p138
        %s217 = sand.u32 %s128, 1
        %s218 = scalar_lea.sflag [#allocation3], %s217
        %s219 = sand.u32 %s128, 1
        %s220 = smul.addr %s219, 16
        %s221 = scalar_lea.vmem [#allocation2], %s220
        %s222 = smul.u32 2, %s24
        %p223 = scmp.lt.s32.totalorder %s23, 1
        %s224 = scalar_select %p223, %s23, 1
        %p225 = scmp.lt.s32.totalorder %s222, 1
        %s226 = scalar_select %p225, %s222, 1
        %s227 = smul.addr %s224, 2
        %s228 = sadd.s32 %s226, %s227
        %s229 = smul.addr %s228, 8
        %s230 = scalar_lea.vmem %s0, %s229
        %s231 = smul.u32 2, %s24
        %p232 = scmp.lt.s32.totalorder %s22, 0
        %s233 = scalar_select %p232, %s22, 0
        %s234 = smul.addr %s233, 8
        %s235 = scalar_lea.vmem %s1, %s234
        %p236 = scmp.lt.s32.totalorder %s22, 0
        %s237 = scalar_select %p236, %s22, 0
        %s238 = scalar_lea.vmem %s2, %s237
        %s239 = smul.u32 2, %s24
        %v240 = vld [vmem:[%s230] sm:$0xff]
        %v241 = vld [vmem:[%s230 + $0x8] sm:$0xff]
        %v242 = vld [vmem:[%s235] sm:$0xff]
        %v243 = vld [vmem:[%s235 + $0x8] sm:$0xff]
        %v244 = vld [vmem:[%s235 + $0x10] sm:$0xff]
        %v245 = vld [vmem:[%s235 + $0x18] sm:$0xff]
        %v246 = vld [vmem:[%s235 + $0x20] sm:$0xff]
        %v247 = vld [vmem:[%s235 + $0x28] sm:$0xff]
        %v248 = vld [vmem:[%s235 + $0x30] sm:$0xff]
        %v249 = vld [vmem:[%s235 + $0x38] sm:$0xff]
        %v250 = vld [vmem:[%s238] sm:$0x1]
        %v252 = vperm.slane %v250, 0
        %vm254 = vcmask 523264
        %v256 = vsel %vm254, %v240, 0
        %v259 = vsel %vm254, %v241, 0
        %261 = vmatpush.msra.mxu0 0.0
        %262 = vmatpush.msra.mxu0 0.0
        %263 = vmatpush.msra.mxu0 0.0
        %264 = vmatpush.msra.mxu0 0.0
        %265 = vmatpush.msra.mxu0 0.0
        %266 = vmatpush.msra.mxu0 0.0
        %267 = vmatpush.msra.mxu0 0.0
        %268 = vmatpush.msra.mxu0 0.0
        %v269 = vand.u32 %v249, 4294901760
        %270 = vmatpush.msra.mxu0 %v269
        %v271 = vand.u32 %v248, 4294901760
        %272 = vmatpush.msra.mxu0 %v271
        %v273 = vand.u32 %v247, 4294901760
        %274 = vmatpush.msra.mxu0 %v273
        %v275 = vand.u32 %v246, 4294901760
        %276 = vmatpush.msra.mxu0 %v275
        %v277 = vand.u32 %v245, 4294901760
        %278 = vmatpush.msra.mxu0 %v277
        %v279 = vand.u32 %v244, 4294901760
        %280 = vmatpush.msra.mxu0 %v279
        %v281 = vand.u32 %v243, 4294901760
        %282 = vmatpush.msra.mxu0 %v281
        %v283 = vand.u32 %v242, 4294901760
        %284 = vmatpush.msra.mxu0 %v283
        %v285 = vand.u32 %v256, 4294901760
        %v286 = vsub.f32 %v256, %v285
        %v287 = vand.u32 %v286, 4294901760
        %v288 = vsub.f32 %v286, %v287
        %v289 = vand.u32 %v288, 4294901760
        %290 = vmatmul.f32.gmra.mxu0 %v289
        %v291 = vpop.f32.mrf.mxu0
        %v292 = vadd.f32 %v252, %v291
        %v293 = vand.u32 %v259, 4294901760
        %v294 = vsub.f32 %v259, %v293
        %v295 = vand.u32 %v294, 4294901760
        %v296 = vsub.f32 %v294, %v295
        %v297 = vand.u32 %v296, 4294901760
        %298 = vmatmul.f32.gmra.mxu0 %v297
        %v299 = vpop.f32.mrf.mxu0
        %v300 = vadd.f32 %v252, %v299
        %301 = vdwg.mxu0
        %302 = vmatpush.msra.mxu0 0.0
        %303 = vmatpush.msra.mxu0 0.0
        %304 = vmatpush.msra.mxu0 0.0
        %305 = vmatpush.msra.mxu0 0.0
        %306 = vmatpush.msra.mxu0 0.0
        %307 = vmatpush.msra.mxu0 0.0
        %308 = vmatpush.msra.mxu0 0.0
        %309 = vmatpush.msra.mxu0 0.0
        %v310 = vand.u32 %v249, 4294901760
        %v311 = vsub.f32 %v249, %v310
        %v312 = vand.u32 %v311, 4294901760
        %v313 = vsub.f32 %v311, %v312
        %v314 = vand.u32 %v313, 4294901760
        %315 = vmatpush.msra.mxu0 %v314
        %v316 = vand.u32 %v248, 4294901760
        %v317 = vsub.f32 %v248, %v316
        %v318 = vand.u32 %v317, 4294901760
        %v319 = vsub.f32 %v317, %v318
        %v320 = vand.u32 %v319, 4294901760
        %321 = vmatpush.msra.mxu0 %v320
        %v322 = vand.u32 %v247, 4294901760
        %v323 = vsub.f32 %v247, %v322
        %v324 = vand.u32 %v323, 4294901760
        %v325 = vsub.f32 %v323, %v324
        %v326 = vand.u32 %v325, 4294901760
        %327 = vmatpush.msra.mxu0 %v326
        %v328 = vand.u32 %v246, 4294901760
        %v329 = vsub.f32 %v246, %v328
        %v330 = vand.u32 %v329, 4294901760
        %v331 = vsub.f32 %v329, %v330
        %v332 = vand.u32 %v331, 4294901760
        %333 = vmatpush.msra.mxu0 %v332
        %v334 = vand.u32 %v245, 4294901760
        %v335 = vsub.f32 %v245, %v334
        %v336 = vand.u32 %v335, 4294901760
        %v337 = vsub.f32 %v335, %v336
        %v338 = vand.u32 %v337, 4294901760
        %339 = vmatpush.msra.mxu0 %v338
        %v340 = vand.u32 %v244, 4294901760
        %v341 = vsub.f32 %v244, %v340
        %v342 = vand.u32 %v341, 4294901760
        %v343 = vsub.f32 %v341, %v342
        %v344 = vand.u32 %v343, 4294901760
        %345 = vmatpush.msra.mxu0 %v344
        %v346 = vand.u32 %v243, 4294901760
        %v347 = vsub.f32 %v243, %v346
        %v348 = vand.u32 %v347, 4294901760
        %v349 = vsub.f32 %v347, %v348
        %v350 = vand.u32 %v349, 4294901760
        %351 = vmatpush.msra.mxu0 %v350
        %v352 = vand.u32 %v242, 4294901760
        %v353 = vsub.f32 %v242, %v352
        %v354 = vand.u32 %v353, 4294901760
        %v355 = vsub.f32 %v353, %v354
        %v356 = vand.u32 %v355, 4294901760
        %357 = vmatpush.msra.mxu0 %v356
        %v358 = vand.u32 %v256, 4294901760
        %359 = vmatmul.f32.gmra.mxu0 %v358
        %v360 = vpop.f32.mrf.mxu0
        %v361 = vadd.f32 %v292, %v360
        %v362 = vand.u32 %v259, 4294901760
        %363 = vmatmul.f32.gmra.mxu0 %v362
        %v364 = vpop.f32.mrf.mxu0
        %v365 = vadd.f32 %v300, %v364
        %366 = vdwg.mxu0
        %367 = vmatpush.msra.mxu0 0.0
        %368 = vmatpush.msra.mxu0 0.0
        %369 = vmatpush.msra.mxu0 0.0
        %370 = vmatpush.msra.mxu0 0.0
        %371 = vmatpush.msra.mxu0 0.0
        %372 = vmatpush.msra.mxu0 0.0
        %373 = vmatpush.msra.mxu0 0.0
        %374 = vmatpush.msra.mxu0 0.0
        %v375 = vand.u32 %v249, 4294901760
        %v376 = vsub.f32 %v249, %v375
        %377 = vmatpush.msra.mxu0 %v376
        %v378 = vand.u32 %v248, 4294901760
        %v379 = vsub.f32 %v248, %v378
        %380 = vmatpush.msra.mxu0 %v379
        %v381 = vand.u32 %v247, 4294901760
        %v382 = vsub.f32 %v247, %v381
        %383 = vmatpush.msra.mxu0 %v382
        %v384 = vand.u32 %v246, 4294901760
        %v385 = vsub.f32 %v246, %v384
        %386 = vmatpush.msra.mxu0 %v385
        %v387 = vand.u32 %v245, 4294901760
        %v388 = vsub.f32 %v245, %v387
        %389 = vmatpush.msra.mxu0 %v388
        %v390 = vand.u32 %v244, 4294901760
        %v391 = vsub.f32 %v244, %v390
        %392 = vmatpush.msra.mxu0 %v391
        %v393 = vand.u32 %v243, 4294901760
        %v394 = vsub.f32 %v243, %v393
        %395 = vmatpush.msra.mxu0 %v394
        %v396 = vand.u32 %v242, 4294901760
        %v397 = vsub.f32 %v242, %v396
        %398 = vmatpush.msra.mxu0 %v397
        %v399 = vand.u32 %v256, 4294901760
        %v400 = vsub.f32 %v256, %v399
        %401 = vmatmul.f32.gmra.mxu0 %v400
        %v402 = vpop.f32.mrf.mxu0
        %v403 = vadd.f32 %v361, %v402
        %v404 = vand.u32 %v259, 4294901760
        %v405 = vsub.f32 %v259, %v404
        %406 = vmatmul.f32.gmra.mxu0 %v405
        %v407 = vpop.f32.mrf.mxu0
        %v408 = vadd.f32 %v365, %v407
        %409 = vdwg.mxu0
        %410 = vmatpush.msra.mxu0 0.0
        %411 = vmatpush.msra.mxu0 0.0
        %412 = vmatpush.msra.mxu0 0.0
        %413 = vmatpush.msra.mxu0 0.0
        %414 = vmatpush.msra.mxu0 0.0
        %415 = vmatpush.msra.mxu0 0.0
        %416 = vmatpush.msra.mxu0 0.0
        %417 = vmatpush.msra.mxu0 0.0
        %v418 = vand.u32 %v249, 4294901760
        %419 = vmatpush.msra.mxu0 %v418
        %v420 = vand.u32 %v248, 4294901760
        %421 = vmatpush.msra.mxu0 %v420
        %v422 = vand.u32 %v247, 4294901760
        %423 = vmatpush.msra.mxu0 %v422
        %v424 = vand.u32 %v246, 4294901760
        %425 = vmatpush.msra.mxu0 %v424
        %v426 = vand.u32 %v245, 4294901760
        %427 = vmatpush.msra.mxu0 %v426
        %v428 = vand.u32 %v244, 4294901760
        %429 = vmatpush.msra.mxu0 %v428
        %v430 = vand.u32 %v243, 4294901760
        %431 = vmatpush.msra.mxu0 %v430
        %v432 = vand.u32 %v242, 4294901760
        %433 = vmatpush.msra.mxu0 %v432
        %v434 = vand.u32 %v256, 4294901760
        %v435 = vsub.f32 %v256, %v434
        %v436 = vand.u32 %v435, 4294901760
        %437 = vmatmul.f32.gmra.mxu0 %v436
        %v438 = vpop.f32.mrf.mxu0
        %v439 = vadd.f32 %v403, %v438
        %v440 = vand.u32 %v259, 4294901760
        %v441 = vsub.f32 %v259, %v440
        %v442 = vand.u32 %v441, 4294901760
        %443 = vmatmul.f32.gmra.mxu0 %v442
        %v444 = vpop.f32.mrf.mxu0
        %v445 = vadd.f32 %v408, %v444
        %446 = vdwg.mxu0
        %447 = vmatpush.msra.mxu0 0.0
        %448 = vmatpush.msra.mxu0 0.0
        %449 = vmatpush.msra.mxu0 0.0
        %450 = vmatpush.msra.mxu0 0.0
        %451 = vmatpush.msra.mxu0 0.0
        %452 = vmatpush.msra.mxu0 0.0
        %453 = vmatpush.msra.mxu0 0.0
        %454 = vmatpush.msra.mxu0 0.0
        %v455 = vand.u32 %v249, 4294901760
        %v456 = vsub.f32 %v249, %v455
        %v457 = vand.u32 %v456, 4294901760
        %458 = vmatpush.msra.mxu0 %v457
        %v459 = vand.u32 %v248, 4294901760
        %v460 = vsub.f32 %v248, %v459
        %v461 = vand.u32 %v460, 4294901760
        %462 = vmatpush.msra.mxu0 %v461
        %v463 = vand.u32 %v247, 4294901760
        %v464 = vsub.f32 %v247, %v463
        %v465 = vand.u32 %v464, 4294901760
        %466 = vmatpush.msra.mxu0 %v465
        %v467 = vand.u32 %v246, 4294901760
        %v468 = vsub.f32 %v246, %v467
        %v469 = vand.u32 %v468, 4294901760
        %470 = vmatpush.msra.mxu0 %v469
        %v471 = vand.u32 %v245, 4294901760
        %v472 = vsub.f32 %v245, %v471
        %v473 = vand.u32 %v472, 4294901760
        %474 = vmatpush.msra.mxu0 %v473
        %v475 = vand.u32 %v244, 4294901760
        %v476 = vsub.f32 %v244, %v475
        %v477 = vand.u32 %v476, 4294901760
        %478 = vmatpush.msra.mxu0 %v477
        %v479 = vand.u32 %v243, 4294901760
        %v480 = vsub.f32 %v243, %v479
        %v481 = vand.u32 %v480, 4294901760
        %482 = vmatpush.msra.mxu0 %v481
        %v483 = vand.u32 %v242, 4294901760
        %v484 = vsub.f32 %v242, %v483
        %v485 = vand.u32 %v484, 4294901760
        %486 = vmatpush.msra.mxu0 %v485
        %v487 = vand.u32 %v256, 4294901760
        %488 = vmatmul.f32.gmra.mxu0 %v487
        %v489 = vpop.f32.mrf.mxu0
        %v490 = vadd.f32 %v439, %v489
        %v491 = vand.u32 %v259, 4294901760
        %492 = vmatmul.f32.gmra.mxu0 %v491
        %v493 = vpop.f32.mrf.mxu0
        %v494 = vadd.f32 %v445, %v493
        %495 = vdwg.mxu0
        %496 = vmatpush.msra.mxu0 0.0
        %497 = vmatpush.msra.mxu0 0.0
        %498 = vmatpush.msra.mxu0 0.0
        %499 = vmatpush.msra.mxu0 0.0
        %500 = vmatpush.msra.mxu0 0.0
        %501 = vmatpush.msra.mxu0 0.0
        %502 = vmatpush.msra.mxu0 0.0
        %503 = vmatpush.msra.mxu0 0.0
        %v504 = vand.u32 %v249, 4294901760
        %505 = vmatpush.msra.mxu0 %v504
        %v506 = vand.u32 %v248, 4294901760
        %507 = vmatpush.msra.mxu0 %v506
        %v508 = vand.u32 %v247, 4294901760
        %509 = vmatpush.msra.mxu0 %v508
        %v510 = vand.u32 %v246, 4294901760
        %511 = vmatpush.msra.mxu0 %v510
        %v512 = vand.u32 %v245, 4294901760
        %513 = vmatpush.msra.mxu0 %v512
        %v514 = vand.u32 %v244, 4294901760
        %515 = vmatpush.msra.mxu0 %v514
        %v516 = vand.u32 %v243, 4294901760
        %517 = vmatpush.msra.mxu0 %v516
        %v518 = vand.u32 %v242, 4294901760
        %519 = vmatpush.msra.mxu0 %v518
        %v520 = vand.u32 %v256, 4294901760
        %521 = vmatmul.f32.gmra.mxu0 %v520
        %v522 = vpop.f32.mrf.mxu0
        %v523 = vadd.f32 %v490, %v522
        %v524 = vand.u32 %v259, 4294901760
        %525 = vmatmul.f32.gmra.mxu0 %v524
        %v526 = vpop.f32.mrf.mxu0
        %v527 = vadd.f32 %v494, %v526
        %528 = vdwg.mxu0
        %vm529 = vcmask 261120
        %530 = vst.msk [vmem:[%s221] sm:$0xff] %vm529, %v523
        %531 = vst.msk [vmem:[%s221 + $0x8] sm:$0xff] %vm529, %v527
        %s532 = sand.u32 %s128, 1
        %s533 = scalar_lea.sflag [#allocation3], %s532
        %s534 = sand.u32 %s128, 1
        %s535 = smul.addr %s534, 16
        %s536 = scalar_lea.vmem [#allocation2], %s535
        // Predicated region
        $region33: #{tpu_custom_call.1} parent=31 // pred_check
          %p537 = pneg %p138
        $region34: #{tpu_custom_call.1} parent=31 // pred_check_branch
          %539 = sbr.rel (%p537) target = $region36
        $region35: #{tpu_custom_call.1} parent=31 // pred_region
          %s540 = smul.u32 2, %s24
          %542 = vsyncadd %s533, 0
          %s543 = sadd.s32 %s22, %s540
          %s544 = smul.addr %s23, 2
          %s545 = sadd.s32 %s543, %s544
          %s546 = smul.addr %s545, 8
          %s547 = scalar_lea.hbm %s3, %s546
          %s548 = sshll.u32 %s536, 4
          %s549 = int_to_ptr.vmem [resolvable:$true] %s548
          %s550 = sshll.u32 %s547, 4
          %s551 = int_to_ptr.hbm [resolvable:$true] %s550
          %556 = dma.vmem_to_hbm [thread:$0]  %s549, 256, %s551, %s533, 128, 128, 8
        $region36: #{tpu_custom_call.1} parent=31 // pred_fallthru
          _
      $region32: #{tpu_custom_call.1} parent=5 // pred_fallthru
        _
      %p557 = scmp.le.s32.totalorder 2, %s12
      // Predicated region
      $region37: #{tpu_custom_call.1} parent=5 // pred_check
        %p558 = pneg %p557
      $region38: #{tpu_custom_call.1} parent=5 // pred_check_branch
        %560 = sbr.rel (%p558) target = $region40
      $region39: #{tpu_custom_call.1} parent=5 // pred_region
        %s561 = ssub.s32 %s12, 2
        // Predicated region
        $region41: #{tpu_custom_call.1} parent=39 // pred_check
          %p562 = pneg %p144
        $region42: #{tpu_custom_call.1} parent=39 // pred_check_branch
          %564 = sbr.rel (%p562) target = $region44
        $region43: #{tpu_custom_call.1} parent=39 // pred_region
          %s565 = sand.u32 %s129, 1
          %s566 = scalar_lea.sflag [#allocation3], %s565
          %s567 = sand.u32 %s129, 1
          %s568 = smul.addr %s567, 16
          %s569 = scalar_lea.vmem [#allocation2], %s568
          %571 = dma.done %s566, 256
        $region44: #{tpu_custom_call.1} parent=39 // pred_fallthru
          _
      $region40: #{tpu_custom_call.1} parent=5 // pred_fallthru
        _
    $region6: #{tpu_custom_call.1} parent=1 // loop_footer
      %s16 = sadd.s32 1, %s12
    $region7: #{tpu_custom_call.1} parent=1 // loop_footer_branch
      %11 = sbr.rel target = $region3
    $region8: #{tpu_custom_call.1} parent=1 // loop_exit
      _
    %572 = vsyncpa [#allocation3], 1
    %s573 = scalar_lea.sflag [#allocation3], 1
    %574 = vsyncpa %s573, 1

</llo_original>
